<compile_context>
chip_gen: v6e
topology: v6e:2x2x1
jax: 0.10.0
libtpu: 0.0.40
codegen_flags: <defaults>
</compile_context>

<pallas_src>
import numpy as np
import jax
import jax.numpy as jnp
from jax.experimental import pallas as pl
from jax.experimental.pallas import tpu as pltpu


# ----------------------------------------------------------------------------- buffers

def make_positional_encoding(d_model: int, max_len: int = 500) -> jnp.ndarray:
    """Deterministic buffer setup, identical math to the PyTorch __init__.

    Returns the canonical (1, max_len, d_model) float32 PE buffer.
    """
    position = np.arange(0, max_len, dtype=np.float32)[:, None]             # (max_len, 1)
    div_term = np.exp(np.arange(0, d_model, 2, dtype=np.float32)
                      * -(np.log(10000.0) / d_model))                       # (ceil(d/2),)
    pe = np.zeros((max_len, d_model), dtype=np.float32)
    pe[:, 0::2] = np.sin(position * div_term)
    pe[:, 1::2] = np.cos(position * div_term[: d_model // 2])
    return jnp.asarray(pe[None, :, :])                                      # (1, max_len, d_model)


def prepare_pe(pe: jnp.ndarray, dtype) -> jnp.ndarray:
    """One-time (init-time) flatten + dtype match of the PE buffer.

    Hoisted out of the per-call path so the forward pays no extra XLA
    slice/convert/copy on the PE table.  (For bf16 activations this rounds PE
    once up-front; same convention as the previous version / in-file reference.)
    """
    _, max_len, d = pe.shape
    return jnp.asarray(pe, dtype=dtype).reshape(1, max_len * d)


# ----------------------------------------------------------------------------- kernel

def _add_pe_kernel(x_ref, pe_ref, o_ref):
    # x_ref : (B, tR, C) or (B, tL) activation tile
    # pe_ref: (1, tR, C) or (1, tL) PE tile -> broadcast over the batch in-register
    o_ref[...] = (x_ref[...] + pe_ref[...]).astype(o_ref.dtype)


# ----------------------------------------------------------------------------- helpers

def _round_up(a: int, b: int) -> int:
    return -(-a // b) * b


def _sublane_tile(itemsize: int) -> int:
    # Minimum sublane tile height per dtype: 8 (f32), 16 (bf16), 32 (int8/fp8).
    return 8 * max(1, 4 // itemsize)


def _vmem_budgets():
    """(pipeline_budget_bytes, vmem_limit_bytes) tuned per generation."""
    cap = None
    try:
        cap = getattr(pltpu.get_tpu_info(), "vmem_capacity_bytes", None)
    except Exception:
        cap = None
    if cap is not None and cap >= 100 * 1024 * 1024:
        # v5e / v6e: 128 MiB physical VMEM -> fewer, larger grid steps.
        return 48 * 1024 * 1024, 96 * 1024 * 1024
    # v7x (64 MiB physical) or unknown: stay conservative.
    return 16 * 1024 * 1024, 32 * 1024 * 1024


def _pick_lane_width(L: int, pe_total: int):
    """Largest multiple-of-128 lane width that divides both L and the PE buffer."""
    for c in (2048, 1024, 512, 384, 256, 128):
        if L % c == 0 and pe_total % c == 0:
            return c
    return None


def _tile_rows(R: int, bytes_per_row_pipelined: int, budget: int, sub: int):
    """Pick a sublane-aligned row-tile and an even-ish grid so both v7x TCs stream."""
    t_max = max(sub, (budget // max(1, bytes_per_row_pipelined)) // sub * sub)
    n = pl.cdiv(R, t_max)
    if n > 1:
        n += n & 1                      # even step count -> balanced across 2 TensorCores
    t = _round_up(pl.cdiv(R, n), sub)
    t = max(sub, min(t, t_max))
    return t, pl.cdiv(R, t)


# ----------------------------------------------------------------------------- forward

def positional_encoding_forward(x: jnp.ndarray, pe_flat: jnp.ndarray, *,
                                min_kernel_bytes: int = 256 * 1024,
                                donate_x: bool = False) -> jnp.ndarray:
    """x: (B, S, D); pe_flat: (1, max_len*D) pre-flattened, dtype-matched PE buffer.

    Returns x + pe[:, :S] (same dtype/shape as x).
    """
    B, S, D = x.shape
    L = S * D
    assert pe_flat.ndim == 2 and pe_flat.shape[0] == 1
    pe_total = pe_flat.shape[1]
    assert L <= pe_total, "sequence length exceeds max_len of the PE buffer"
    if pe_flat.dtype != x.dtype:
        # Should be hoisted via prepare_pe(); keep a safety cast for correctness.
        pe_flat = pe_flat.astype(x.dtype)

    itemsize = x.dtype.itemsize
    sub = _sublane_tile(itemsize)

    # Tiny inputs: XLA's fused elementwise add is already at roofline; a pallas_call
    # would only pay launch + grid overhead at this scale.
    if B * L * itemsize < min_kernel_bytes:
        return x + pe_flat[0, :L].reshape(1, S, D)

    budget, vmem_limit = _vmem_budgets()
    compiler_params = pltpu.CompilerParams(
        dimension_semantics=("parallel",),      # shards grid across both TCs on v7x
        vmem_limit_bytes=vmem_limit,
    )
    io_alias = {0: 0} if donate_x else {}       # caller must genuinely donate x

    C = _pick_lane_width(L, pe_total)
    if C is not None and (L // C) >= sub:
        # ---- Primary path: 3-D (B, R, C) view. Sublane dim = tR (multiple of the
        # dtype tile height) -> full vreg/VMEM utilization for any B; lane dim = C
        # (>=128) -> unmasked, lane-dense stores.  PE tile DMA'd once per tile and
        # broadcast over B in-register.
        R = L // C
        x_v = x.reshape(B, R, C)
        pe_v = pe_flat.reshape(1, pe_total // C, C)     # rows 0..R-1 align with x's rows

        # Double-buffered pipeline footprint per tR row: x + out (B rows each) + pe (1 row).
        bytes_per_row = 2 * (2 * B + 1) * C * itemsize
        tR, n_steps = _tile_rows(R, bytes_per_row, budget, sub)

        out = pl.pallas_call(
            _add_pe_kernel,
            out_shape=jax.ShapeDtypeStruct((B, R, C), x.dtype),
            grid_spec=pltpu.PrefetchScalarGridSpec(
                num_scalar_prefetch=0,
                grid=(n_steps,),
                in_specs=[
                    # TODO(synk): sweep pipeline_mode=pl.Buffered(3) on x once profiled
                    # (VMEM formula above leaves headroom); revert if no gain.
                    pl.BlockSpec((B, tR, C), lambda r: (0, r, 0)),
                    pl.BlockSpec((1, tR, C), lambda r: (0, r, 0)),
                ],
                out_specs=pl.BlockSpec((B, tR, C), lambda r: (0, r, 0)),
            ),
            compiler_params=compiler_params,
            input_output_aliases=io_alias,
        )(x_v, pe_v)
        return out.reshape(B, S, D)

    # ---- Fallback: flattened (B, L) layout (no multiple-of-128 lane width divides L,
    # or the per-row payload is too small to row-tile). Sublane dim is B here, so the
    # VMEM formula rounds B (and PE's single row) up to the dtype sublane tile.
    x_v = x.reshape(B, L)
    b_pad = _round_up(B, sub)
    bytes_per_col = 2 * (2 * b_pad + sub) * itemsize     # padding-corrected, double-buffered
    t_l = max(128, (budget // bytes_per_col) // 128 * 128)
    n_steps = pl.cdiv(L, t_l)
    if n_steps > 1:
        n_steps += n_steps & 1                           # even steps for 2-TC balance
        t_l = max(128, _round_up(pl.cdiv(L, n_steps), 128))
    t_l = min(t_l, _round_up(L, 128))                    # small problems: one full-width block
    n_steps = pl.cdiv(L, t_l)

    out = pl.pallas_call(
        _add_pe_kernel,
        out_shape=jax.ShapeDtypeStruct((B, L), x.dtype),
        grid_spec=pltpu.PrefetchScalarGridSpec(
            num_scalar_prefetch=0,
            grid=(n_steps,),
            in_specs=[
                pl.BlockSpec((B, t_l), lambda l: (0, l)),
                pl.BlockSpec((1, t_l), lambda l: (0, l)),   # indexes the full PE buffer directly
            ],
            out_specs=pl.BlockSpec((B, t_l), lambda l: (0, l)),
        ),
        compiler_params=compiler_params,
        input_output_aliases=io_alias,
    )(x_v, pe_flat)
    return out.reshape(B, S, D)


# ----------------------------------------------------------------------------- demo

if __name__ == "__main__":
    B, S, D = 2, 8, 32
    max_len = 500

    key = jax.random.PRNGKey(0)
    x = jax.random.normal(key, (B, S, D), dtype=jnp.float32)

    pe = make_positional_encoding(D, max_len=max_len)     # (1, max_len, D) float32
    pe_flat = prepare_pe(pe, x.dtype)                      # hoisted once at "init"

    ref = np.asarray(x) + np.asarray(pe[:, :S, :])

    # 1) Default call at demo scale -> tiny-input plain-JAX fast path.
    out_fast = jax.block_until_ready(positional_encoding_forward(x, pe_flat))
    np.testing.assert_allclose(np.asarray(out_fast), ref, rtol=1e-6, atol=1e-6)

    # 2) Force the Pallas kernel at the demo shape (exercises the flattened 2-D path,
    #    since L = 256 is below the 3-D row-tiling threshold).
    out_k2d = jax.block_until_ready(
        positional_encoding_forward(x, pe_flat, min_kernel_bytes=0))
    np.testing.assert_allclose(np.asarray(out_k2d), ref, rtol=1e-6, atol=1e-6)

    # 3) Exercise the primary 3-D row-tiled kernel path on a longer sequence.
    S2 = 64
    x2 = jax.random.normal(jax.random.PRNGKey(0), (B, S2, D), dtype=jnp.float32)
    ref2 = np.asarray(x2) + np.asarray(pe[:, :S2, :])
    out_k3d = jax.block_until_ready(
        positional_encoding_forward(x2, pe_flat, min_kernel_bytes=0))
    np.testing.assert_allclose(np.asarray(out_k3d), ref2, rtol=1e-6, atol=1e-6)

    print("KERNEL_OK")
</pallas_src>

<mosaic_0001>
module attributes {stable_mosaic.version = 11 : i64} {
  func.func @_add_pe_kernel(%arg0: i32, %arg1: memref<2x256xf32, #tpu.memory_space<vmem>>, %arg2: memref<1x256xf32, #tpu.memory_space<vmem>>, %arg3: memref<2x256xf32, #tpu.memory_space<vmem>>) attributes {dimension_semantics = [#tpu.dimension_semantics<parallel>], iteration_bounds = array<i64: 1>, scalar_prefetch = 0 : i64, scratch_operands = 0 : i64, tpu.core_type = #tpu.core_type<tc>, window_params = [{transform_indices = @transform_0, window_bounds = array<i64: 2, 256>}, {transform_indices = @transform_1, window_bounds = array<i64: 1, 256>}, {transform_indices = @transform_2, window_bounds = array<i64: 2, 256>}]} {
    %c0 = arith.constant 0 : index
    %c0_0 = arith.constant 0 : index
    %0 = vector.load %arg1[%c0, %c0_0] : memref<2x256xf32, #tpu.memory_space<vmem>>, vector<2x256xf32>
    %c0_1 = arith.constant 0 : index
    %c0_2 = arith.constant 0 : index
    %1 = vector.load %arg2[%c0_1, %c0_2] : memref<1x256xf32, #tpu.memory_space<vmem>>, vector<1x256xf32>
    %2 = vector.broadcast %1 : vector<1x256xf32> to vector<2x256xf32>
    %3 = arith.addf %0, %2 : vector<2x256xf32>
    %c0_3 = arith.constant 0 : index
    %c0_4 = arith.constant 0 : index
    %4 = vector.load %arg3[%c0_3, %c0_4] : memref<2x256xf32, #tpu.memory_space<vmem>>, vector<2x256xf32>
    tpu.vector_store %arg3[%c0_3, %c0_4], %3 {strides = array<i32>} : memref<2x256xf32, #tpu.memory_space<vmem>>, vector<2x256xf32>,
    return
  }
  func.func @transform_0(%arg0: i32) -> (i32, i32) {
    %c0_i32 = arith.constant 0 : i32
    %c0_i32_0 = arith.constant 0 : i32
    return %c0_i32, %arg0 : i32, i32
  }
  func.func @transform_1(%arg0: i32) -> (i32, i32) {
    %c0_i32 = arith.constant 0 : i32
    %c0_i32_0 = arith.constant 0 : i32
    return %c0_i32, %arg0 : i32, i32
  }
  func.func @transform_2(%arg0: i32) -> (i32, i32) {
    %c0_i32 = arith.constant 0 : i32
    %c0_i32_0 = arith.constant 0 : i32
    return %c0_i32, %arg0 : i32, i32
  }
}

</mosaic_0001>

<llo_original>
// kernel: tpu_custom_call.1
$region0: #{tpu_custom_call.1}
  #allocation0 [shape = 'u32[]', space=smem, size = 0x4, offset = 0x4, fixed_abs, tag = 'smem constant byte address 0x4 - core index']
  #allocation1 [shape = 'u32[144,128]{1,0:T(1,128)}', space=vmem, size = 0x12000, scoped, tag = 'internal scratch']
  %s0 = inlined_call_operand.hbm [shape: f32[2,256], index: 0, kind: input, shape index: {}]
  %s1 = inlined_call_operand.hbm [shape: f32[1,16000], index: 1, kind: input, shape index: {}]
  %s2 = inlined_call_operand.hbm [shape: f32[2,256], index: 2, kind: output, shape index: {}]
  %s3 = sld [smem:[#allocation0]]
  $region26: #{tpu_custom_call.1} parent=0
    _
  %s5 = ssub.s32 1, %s3
  %s6 = scalar_select 0, %s5, %s3
  $region1: #{tpu_custom_call.1} parent=0
    #allocation2 [shape = 'u8[2048]{0}', space=vmem, size = 0x800, scoped, tag = 'input window, operand 0, single buffered']
    #allocation3 [shape = 's32[1]{0}', space=sflag, size = 0x4, scoped, tag = 'scoped memory for tpu_custom_call.1']
    #allocation4 [shape = 's32[1]{0}', space=sflag, size = 0x4, scoped, tag = 'scoped memory for tpu_custom_call.1']
    #allocation5 [shape = 'u8[1024]{0}', space=vmem, size = 0x400, scoped, tag = 'input window, operand 1, single buffered']
    #allocation6 [shape = 's32[1]{0}', space=sflag, size = 0x4, scoped, tag = 'scoped memory for tpu_custom_call.1']
    #allocation7 [shape = 'u8[2048]{0}', space=vmem, size = 0x800, scoped, tag = 'output window, operand 0, single buffered']
    %7 = vsyncpa [#allocation3], 0
    %8 = vsyncpa [#allocation6], 0
    %9 = vsyncpa [#allocation4], 0
    // Predicated region
    $region2: #{tpu_custom_call.1} parent=1 // pred_check
      _
    $region3: #{tpu_custom_call.1} parent=1 // pred_check_branch
      %11 = sbr.rel (0) target = $region5
    $region4: #{tpu_custom_call.1} parent=1 // pred_region
      %s13 = ssub.s32 64, 64
      %14 = vsyncadd [#allocation3], %s13
      %s16 = sshll.u32 [#allocation2], 4
      %s17 = int_to_ptr.vmem [resolvable:$true] %s16
      %19 = dma.hbm_to_vmem [thread:$0]  %s0, 64, %s17, [#allocation3]
    $region5: #{tpu_custom_call.1} parent=1 // pred_fallthru
      _
    // Predicated region
    $region6: #{tpu_custom_call.1} parent=1 // pred_check
      _
    $region7: #{tpu_custom_call.1} parent=1 // pred_check_branch
      %21 = sbr.rel (0) target = $region9
    $region8: #{tpu_custom_call.1} parent=1 // pred_region
      %s23 = ssub.s32 32, 32
      %24 = vsyncadd [#allocation6], %s23
      %s26 = sshll.u32 [#allocation5], 4
      %s27 = int_to_ptr.vmem [resolvable:$true] %s26
      %29 = dma.hbm_to_vmem [thread:$0]  %s1, 32, %s27, [#allocation6]
    $region9: #{tpu_custom_call.1} parent=1 // pred_fallthru
      _
    // Predicated region
    $region10: #{tpu_custom_call.1} parent=1 // pred_check
      _
    $region11: #{tpu_custom_call.1} parent=1 // pred_check_branch
      %31 = sbr.rel (0) target = $region13
    $region12: #{tpu_custom_call.1} parent=1 // pred_region
      %32 = dma.done [#allocation3], 64
    $region13: #{tpu_custom_call.1} parent=1 // pred_fallthru
      _
    // Predicated region
    $region14: #{tpu_custom_call.1} parent=1 // pred_check
      _
    $region15: #{tpu_custom_call.1} parent=1 // pred_check_branch
      %34 = sbr.rel (0) target = $region17
    $region16: #{tpu_custom_call.1} parent=1 // pred_region
      %35 = dma.done [#allocation6], 32
    $region17: #{tpu_custom_call.1} parent=1 // pred_fallthru
      _
    %v36 = vld [vmem:[#allocation2] sm:$0xf]
    %v37 = vld [vmem:[#allocation5] sm:$0x3]
    %v39 = vlaneseq
    %v40 = vshrl.u32 %v39, 7
    %v41 = vsub.s32 0, %v40
    %v42 = vrot.slane %v37, %v41
    %v43 = vlaneseq
    %v44 = vshrl.u32 %v43, 7
    %v45 = vsub.s32 1, %v44
    %v46 = vrot.slane %v37, %v45
    %v47 = vcombine.low %v42, %v46
    %v49 = vunpack.c.l.s4 1983009808
    %v50 = vunpack.c.0.s8 %v49
    %v51 = vlaneseq
    %v52 = vshrl.u32 %v51, 7
    %v53 = vsub.s32 %v50, %v52
    %v54 = vrot.slane %v47, %v53
    %v56 = vadd.f32 %v36, %v54
    %57 = vst [vmem:[#allocation7] sm:$0xf] %v56
    // Predicated region
    $region18: #{tpu_custom_call.1} parent=1 // pred_check
      _
    $region19: #{tpu_custom_call.1} parent=1 // pred_check_branch
      %59 = sbr.rel (0) target = $region21
    $region20: #{tpu_custom_call.1} parent=1 // pred_region
      %s61 = ssub.s32 64, 64
      %62 = vsyncadd [#allocation4], %s61
      %s64 = sshll.u32 [#allocation7], 4
      %s65 = int_to_ptr.vmem [resolvable:$true] %s64
      %67 = dma.vmem_to_hbm [thread:$0]  %s65, 64, %s2, [#allocation4]
    $region21: #{tpu_custom_call.1} parent=1 // pred_fallthru
      _
    // Predicated region
    $region22: #{tpu_custom_call.1} parent=1 // pred_check
      _
    $region23: #{tpu_custom_call.1} parent=1 // pred_check_branch
      %69 = sbr.rel (0) target = $region25
    $region24: #{tpu_custom_call.1} parent=1 // pred_region
      %70 = dma.done [#allocation4], 64
    $region25: #{tpu_custom_call.1} parent=1 // pred_fallthru
      _
    %71 = vsyncpa [#allocation3], 1
    %72 = vsyncpa [#allocation6], 1
    %73 = vsyncpa [#allocation4], 1

</llo_original>
